<compile_context>
chip_gen: v6e
topology: v6e:2x2x1
jax: 0.10.0
libtpu: 0.0.40
codegen_flags: <defaults>
</compile_context>

<pallas_src>
import math

import jax
import jax.numpy as jnp
from jax.experimental import pallas as pl
from jax.experimental.pallas import tpu as pltpu


_LANE_CANDIDATES = (4096, 2048, 1024, 512, 256, 128)   # multiples of 128
_TILE_BYTES_COMBINED = 8 * 1024 * 1024   # ~4 MiB input + ~4 MiB output block
_MIN_SPLIT_BYTES = 1 * 1024 * 1024       # split into >=2 blocks above this (v7x)
_SMALL_BYPASS_BYTES = 512 * 1024         # below this, plain XLA fuses better
_VMEM_CAP_BYTES = 48 * 1024 * 1024       # generation-aware cap (v7x: 64 MiB/TC)


def _round_up(a, b):
    return -(-a // b) * b


def _cdiv(a, b):
    return -(-a // b)


def _make_lambda_kernel(lambd):
    """Pallas kernel body closing over the module's (elementwise) lambda."""
    def kernel(x_ref, o_ref):
        # NOTE: a partial last block reads stale VMEM in the masked region.
        # Safe only because `lambd` is elementwise and masked writes are
        # dropped — do not put axis-dependent ops in `lambd`.
        o_ref[...] = lambd(x_ref[...]).astype(o_ref.dtype)
    return kernel


def _apply_elementwise_pallas(lambd, flat, lane, out_dtype):
    """Apply elementwise `lambd` over a flat array viewed as [rows, lane]."""
    total = flat.shape[0]
    rows = total // lane
    x2d = flat.reshape(rows, lane)

    in_itemsize = jnp.dtype(flat.dtype).itemsize
    out_itemsize = jnp.dtype(out_dtype).itemsize
    # Sublane alignment from the stricter (narrower) of the two dtypes so both
    # the input load and the output store stay unmasked.
    sublane = max(8, 32 // min(in_itemsize, out_itemsize))

    # Tile sizing from combined in+out footprint (~4 MiB per side for equal
    # itemsizes), aligned down to the sublane multiple.
    budget_rows = _TILE_BYTES_COMBINED // (lane * (in_itemsize + out_itemsize))
    row_tile = max(sublane, (budget_rows // sublane) * sublane)

    combined_bytes = total * (in_itemsize + out_itemsize)
    if rows <= row_tile:
        if combined_bytes >= _MIN_SPLIT_BYTES and rows >= 2 * sublane:
            # Mid-sized tensor that would otherwise be a single block: split
            # so both v7x TensorCores get work (no-op on single-TC v5e/v6e).
            row_tile = _round_up(_cdiv(rows, 2), sublane)
        else:
            row_tile = rows          # single block == full extent (legal)
    num_blocks = _cdiv(rows, row_tile)

    in_block_bytes = row_tile * lane * in_itemsize
    out_block_bytes = row_tile * lane * out_itemsize
    # Double-buffered in + out blocks plus a little headroom; keep the default
    # 2-deep pipeline (kernel is HBM-bound, deeper buffering adds nothing).
    vmem_limit = 2 * (in_block_bytes + out_block_bytes) + 2 * 1024 * 1024
    vmem_limit = int(min(_VMEM_CAP_BYTES, max(16 * 1024 * 1024, vmem_limit)))

    try:
        cost = pl.estimate_cost(lambd, jax.ShapeDtypeStruct((rows, lane), flat.dtype))
    except Exception:
        cost = pl.CostEstimate(
            flops=2 * total,
            transcendentals=0,
            bytes_accessed=total * (in_itemsize + out_itemsize),
        )

    out2d = pl.pallas_call(
        _make_lambda_kernel(lambd),
        out_shape=jax.ShapeDtypeStruct((rows, lane), out_dtype),
        grid_spec=pltpu.PrefetchScalarGridSpec(
            num_scalar_prefetch=0,
            grid=(num_blocks,),
            in_specs=[pl.BlockSpec((row_tile, lane), lambda i: (i, 0))],
            out_specs=pl.BlockSpec((row_tile, lane), lambda i: (i, 0)),
        ),
        compiler_params=pltpu.CompilerParams(
            dimension_semantics=("parallel",),   # megacore-shardable on v7x
            vmem_limit_bytes=vmem_limit,
        ),
        cost_estimate=cost,
    )(x2d)
    return out2d.reshape(-1)


def make_lambda_module(lambd, *, identity=False, elementwise=True,
                       min_pallas_bytes=_SMALL_BYPASS_BYTES):
    """Return a callable equivalent to LambdaModule(lambd).forward.

    The Pallas fast path assumes `lambd` is a JAX-traceable ELEMENTWISE,
    shape-preserving function (the common case in the NAS op space).  Use
    identity=True for the skip op (no launch at all) and elementwise=False for
    shape-preserving but non-elementwise lambdas (softmax/roll/...) which must
    run as plain JAX — the flattened tiling would silently corrupt them.
    """
    # TODO(synk): auto-detect non-elementwise lambdas (inspect the jaxpr for
    # reductions / axis-dependent ops) instead of relying on the flag.

    def forward(x):
        if identity:
            return x                      # skip op: zero HBM traffic
        if not elementwise:
            return lambd(x)               # declared non-elementwise

        orig_shape = x.shape
        total = math.prod(orig_shape) if orig_shape else 1

        try:
            out_aval = jax.eval_shape(lambd, jax.ShapeDtypeStruct(x.shape, x.dtype))
            shape_ok = out_aval.shape == tuple(orig_shape)
        except Exception:
            shape_ok = False
        if not shape_ok:
            return lambd(x)               # shape-changing lambda: plain JAX
        out_dtype = out_aval.dtype

        in_itemsize = jnp.dtype(x.dtype).itemsize
        out_itemsize = jnp.dtype(out_dtype).itemsize

        # Small-tensor bypass: for tiny NAS activations XLA's fused
        # elementwise path beats a custom call (and can skip the HBM trip).
        if total * (in_itemsize + out_itemsize) < min_pallas_bytes:
            return lambd(x)

        sublane = max(8, 32 // min(in_itemsize, out_itemsize))
        flat = x.reshape(-1)

        # Lane-dense layout: prefer the largest lane where rows is also
        # sublane-aligned (full unmasked vregs on both load and store).
        lane = None
        for cand in _LANE_CANDIDATES:
            r = total // cand
            if total % cand == 0 and r > 0 and r % sublane == 0:
                lane = cand
                break
        if lane is None:
            for cand in _LANE_CANDIDATES:
                if total % cand == 0:
                    lane = cand
                    break

        if lane is not None:
            out_flat = _apply_elementwise_pallas(lambd, flat, lane, out_dtype)
            return out_flat.reshape(orig_shape)

        # Unaligned element count: run the kernel over the sublane*128-aligned
        # prefix and do the tiny tail in plain JAX (avoids a full-tensor pad).
        lane = 128
        prefix_rows = (total // (sublane * lane)) * sublane
        prefix = prefix_rows * lane
        if prefix_rows == 0:
            return lambd(x)
        head = _apply_elementwise_pallas(lambd, flat[:prefix], lane, out_dtype)
        tail = lambd(flat[prefix:]).astype(out_dtype)
        out_flat = jnp.concatenate([head, tail])
        return out_flat.reshape(orig_shape)

    return forward


if __name__ == "__main__":
    key = jax.random.PRNGKey(0)
    x = jax.random.normal(key, (2, 4, 16, 16), dtype=jnp.float32)

    # 1) Non-trivial elementwise lambda; force the Pallas path for this small
    #    test tensor (default behavior would bypass to fused XLA).
    lambd = lambda t: jnp.where(t > 0, t, 0.2 * t)
    module = make_lambda_module(lambd, min_pallas_bytes=0)
    y = module(x)
    jax.block_until_ready(y)
    ref = lambd(x)
    assert y.shape == x.shape and y.dtype == ref.dtype
    assert jnp.allclose(y, ref, atol=1e-6, rtol=1e-6), "mismatch vs reference lambda"

    # 2) Unaligned element count -> aligned-prefix kernel + plain-JAX tail.
    x_odd = jax.random.normal(jax.random.PRNGKey(1), (3, 5, 7, 11), dtype=jnp.float32)
    y_odd = module(x_odd)
    jax.block_until_ready(y_odd)
    assert jnp.allclose(y_odd, lambd(x_odd), atol=1e-6, rtol=1e-6)

    # 3) Larger tensor through the default path (exercises the >=2-block split
    #    used for v7x megacore balance and multi-block pipelining).
    x_big = jax.random.normal(jax.random.PRNGKey(2), (8, 32, 64, 64), dtype=jnp.float32)
    module_default = make_lambda_module(lambd)
    y_big = module_default(x_big)
    jax.block_until_ready(y_big)
    assert jnp.allclose(y_big, lambd(x_big), atol=1e-6, rtol=1e-6)

    # 4) Dtype-widening lambda (bf16 -> f32): exercises narrow-dtype sublane
    #    alignment and out-dtype handling.
    widen = lambda t: t.astype(jnp.float32) * 2.0 + 1.0
    x_bf16 = jax.random.normal(jax.random.PRNGKey(3), (2, 4, 16, 16)).astype(jnp.bfloat16)
    y_w = make_lambda_module(widen, min_pallas_bytes=0)(x_bf16)
    jax.block_until_ready(y_w)
    assert y_w.dtype == jnp.float32
    assert jnp.allclose(y_w, widen(x_bf16), atol=1e-2, rtol=1e-2)

    # 5) Small-tensor bypass + identity skip op (the dominant NAS uses).
    y_bypass = module_default(x)
    jax.block_until_ready(y_bypass)
    assert jnp.allclose(y_bypass, ref, atol=1e-6, rtol=1e-6)
    skip = make_lambda_module(lambda t: t, identity=True)
    assert jnp.array_equal(skip(x), x)

    print("KERNEL_OK")
</pallas_src>

<mosaic_0001>
module attributes {stable_mosaic.version = 11 : i64} {
  func.func @kernel(%arg0: i32, %arg1: memref<8x256xf32, #tpu.memory_space<vmem>>, %arg2: memref<8x256xf32, #tpu.memory_space<vmem>>) attributes {dimension_semantics = [#tpu.dimension_semantics<parallel>], iteration_bounds = array<i64: 1>, scalar_prefetch = 0 : i64, scratch_operands = 0 : i64, tpu.core_type = #tpu.core_type<tc>, window_params = [{transform_indices = @transform_0, window_bounds = array<i64: 8, 256>}, {transform_indices = @transform_1, window_bounds = array<i64: 8, 256>}]} {
    %c0 = arith.constant 0 : index
    %c0_0 = arith.constant 0 : index
    %0 = vector.load %arg1[%c0, %c0_0] : memref<8x256xf32, #tpu.memory_space<vmem>>, vector<8x256xf32>
    %cst = arith.constant 0.000000e+00 : f32
    %1 = vector.broadcast %cst : f32 to vector<8x256xf32>
    %2 = arith.cmpf ogt, %0, %1 : vector<8x256xf32>
    %cst_1 = arith.constant 2.000000e-01 : f32
    %3 = vector.broadcast %cst_1 : f32 to vector<8x256xf32>
    %4 = arith.mulf %3, %0 : vector<8x256xf32>
    %5 = arith.select %2, %0, %4 : vector<8x256xi1>, vector<8x256xf32>
    %c0_2 = arith.constant 0 : index
    %c0_3 = arith.constant 0 : index
    %6 = vector.load %arg2[%c0_2, %c0_3] : memref<8x256xf32, #tpu.memory_space<vmem>>, vector<8x256xf32>
    tpu.vector_store %arg2[%c0_2, %c0_3], %5 {strides = array<i32>} : memref<8x256xf32, #tpu.memory_space<vmem>>, vector<8x256xf32>,
    return
  }
  func.func @transform_0(%arg0: i32) -> (i32, i32) {
    %c0_i32 = arith.constant 0 : i32
    %c0_i32_0 = arith.constant 0 : i32
    return %arg0, %c0_i32 : i32, i32
  }
  func.func @transform_1(%arg0: i32) -> (i32, i32) {
    %c0_i32 = arith.constant 0 : i32
    %c0_i32_0 = arith.constant 0 : i32
    return %arg0, %c0_i32 : i32, i32
  }
}

</mosaic_0001>

<llo_original>
// kernel: tpu_custom_call.1
$region0: #{tpu_custom_call.1}
  #allocation0 [shape = 'u32[]', space=smem, size = 0x4, offset = 0x4, fixed_abs, tag = 'smem constant byte address 0x4 - core index']
  #allocation1 [shape = 'u32[144,128]{1,0:T(1,128)}', space=vmem, size = 0x12000, scoped, tag = 'internal scratch']
  %s0 = inlined_call_operand.hbm [shape: f32[8,256], index: 0, kind: input, shape index: {}]
  %s1 = inlined_call_operand.hbm [shape: f32[8,256], index: 1, kind: output, shape index: {}]
  %s2 = sld [smem:[#allocation0]]
  $region18: #{tpu_custom_call.1} parent=0
    _
  %s4 = ssub.s32 1, %s2
  %s5 = scalar_select 0, %s4, %s2
  $region1: #{tpu_custom_call.1} parent=0
    #allocation2 [shape = 'u8[8192]{0}', space=vmem, size = 0x2000, scoped, tag = 'input window, operand 0, single buffered']
    #allocation3 [shape = 's32[1]{0}', space=sflag, size = 0x4, scoped, tag = 'scoped memory for tpu_custom_call.1']
    #allocation4 [shape = 's32[1]{0}', space=sflag, size = 0x4, scoped, tag = 'scoped memory for tpu_custom_call.1']
    #allocation5 [shape = 'u8[8192]{0}', space=vmem, size = 0x2000, scoped, tag = 'output window, operand 0, single buffered']
    %6 = vsyncpa [#allocation3], 0
    %7 = vsyncpa [#allocation4], 0
    // Predicated region
    $region2: #{tpu_custom_call.1} parent=1 // pred_check
      _
    $region3: #{tpu_custom_call.1} parent=1 // pred_check_branch
      %9 = sbr.rel (0) target = $region5
    $region4: #{tpu_custom_call.1} parent=1 // pred_region
      %s11 = ssub.s32 256, 256
      %12 = vsyncadd [#allocation3], %s11
      %s14 = sshll.u32 [#allocation2], 4
      %s15 = int_to_ptr.vmem [resolvable:$true] %s14
      %17 = dma.hbm_to_vmem [thread:$0]  %s0, 256, %s15, [#allocation3]
    $region5: #{tpu_custom_call.1} parent=1 // pred_fallthru
      _
    // Predicated region
    $region6: #{tpu_custom_call.1} parent=1 // pred_check
      _
    $region7: #{tpu_custom_call.1} parent=1 // pred_check_branch
      %19 = sbr.rel (0) target = $region9
    $region8: #{tpu_custom_call.1} parent=1 // pred_region
      %20 = dma.done [#allocation3], 256
    $region9: #{tpu_custom_call.1} parent=1 // pred_fallthru
      _
    %v21 = vld [vmem:[#allocation2] sm:$0xff]
    %v22 = vld [vmem:[#allocation2 + $0x8] sm:$0xff]
    %vm23 = vcmp.gt.f32.partialorder %v21, 0.0
    %vm24 = vcmp.gt.f32.partialorder %v22, 0.0
    %v25 = vmul.f32 %v21, 0.2
    %v26 = vmul.f32 %v22, 0.2
    %v27 = vsel %vm23, %v21, %v25
    %v28 = vsel %vm24, %v22, %v26
    %29 = vst [vmem:[#allocation5] sm:$0xff] %v27
    %30 = vst [vmem:[#allocation5 + $0x8] sm:$0xff] %v28
    // Predicated region
    $region10: #{tpu_custom_call.1} parent=1 // pred_check
      _
    $region11: #{tpu_custom_call.1} parent=1 // pred_check_branch
      %32 = sbr.rel (0) target = $region13
    $region12: #{tpu_custom_call.1} parent=1 // pred_region
      %s34 = ssub.s32 256, 256
      %35 = vsyncadd [#allocation4], %s34
      %s37 = sshll.u32 [#allocation5], 4
      %s38 = int_to_ptr.vmem [resolvable:$true] %s37
      %40 = dma.vmem_to_hbm [thread:$0]  %s38, 256, %s1, [#allocation4]
    $region13: #{tpu_custom_call.1} parent=1 // pred_fallthru
      _
    // Predicated region
    $region14: #{tpu_custom_call.1} parent=1 // pred_check
      _
    $region15: #{tpu_custom_call.1} parent=1 // pred_check_branch
      %42 = sbr.rel (0) target = $region17
    $region16: #{tpu_custom_call.1} parent=1 // pred_region
      %43 = dma.done [#allocation4], 256
    $region17: #{tpu_custom_call.1} parent=1 // pred_fallthru
      _
    %44 = vsyncpa [#allocation3], 1
    %45 = vsyncpa [#allocation4], 1

</llo_original>
